<compile_context>
chip_gen: v7x
topology: tpu7x:2x2x1
jax: 0.10.0
libtpu: 0.0.40
codegen_flags: <defaults>
</compile_context>

<pallas_src>
import jax
import jax.numpy as jnp
from jax import lax
from jax.experimental import pallas as pl
from jax.experimental.pallas import tpu as pltpu

MARGIN = 0.05
COS_EPS = 1e-8  # torch.nn.CosineSimilarity default eps


def _round_up(n, m):
    return ((n + m - 1) // m) * m


def _vmem_budget_bytes(tb, hp, dp):
    x_tile = 4 * tb * hp * 2          # bf16 stacked input tile
    w_tile = hp * dp * 2              # bf16 weight (resident)
    out_tile = tb * 4                 # f32 hinge tile
    emb_tmp = 4 * tb * dp * 4         # f32 embedding temporary
    total = 2 * (x_tile + out_tile) + 2 * w_tile + emb_tmp
    # 2x headroom for compiler temporaries, capped well under v7x's 64 MiB.
    return int(min(2 * total + (4 << 20), 48 << 20))


def _rel_relatedness_kernel(x_ref, w_ref, hinge_ref):
    tb = hinge_ref.shape[0]

    # Synthetic "model": one MXU matmul covers all four encoder passes of this
    # batch tile. bf16 inputs, f32 accumulation.
    e = jnp.dot(x_ref[...], w_ref[...],
                preferred_element_type=jnp.float32)          # [4*TB, Dp] f32

    ea1 = e[0 * tb:1 * tb]
    eb1 = e[1 * tb:2 * tb]
    ea2 = e[2 * tb:3 * tb]
    eb2 = e[3 * tb:4 * tb]

    def cosine(u, v):
        # torch: u.v / (max(||u||, eps) * max(||v||, eps))
        #      = u.v * rsqrt(max(||u||^2, eps^2) * max(||v||^2, eps^2))
        duv = jnp.sum(u * v, axis=1, keepdims=True)          # [TB, 1]
        nu2 = jnp.sum(u * u, axis=1, keepdims=True)
        nv2 = jnp.sum(v * v, axis=1, keepdims=True)
        inv = lax.rsqrt(jnp.maximum(nu2, COS_EPS * COS_EPS) *
                        jnp.maximum(nv2, COS_EPS * COS_EPS))
        return duv * inv                                     # [TB, 1]

    rel1 = cosine(ea1, eb1)
    rel2 = cosine(ea2, eb2)

    # Per-row hinge; global mean over the true batch happens in the wrapper.
    hinge_ref[...] = jnp.maximum(MARGIN + rel2 - rel1, 0.0)


def relative_relatedness_loss(a1, b1, a2, b2, w, *, tb=None):
    """a1,b1,a2,b2: [B, H] f32 sentence features; w: [H, D] f32 encoder weight."""
    B, H = a1.shape
    Hw, D = w.shape
    assert H == Hw

    # Lane-dense padding: H, D -> multiples of 128. Zero padding contributes
    # nothing to the matmul or the cosine dot/norm reductions.
    Hp = _round_up(H, 128)
    Dp = _round_up(D, 128)

    # Batch tile: multiple of 16 (bf16 sublane tile), default capped at 512
    # rows so double-buffered tiles stay well inside v7x's 64 MiB VMEM.
    if tb is None:
        tb = min(512, _round_up(B, 16))
    tb = max(16, _round_up(tb, 16))
    n_tiles = pl.cdiv(B, tb)
    Bp = n_tiles * tb

    # Stack the four feature batches and interleave them per batch tile so a
    # single 2-D block (4*TB, Hp) per grid step holds a1|b1|a2|b2 of that tile.
    x = jnp.stack([a1, b1, a2, b2], axis=0)                    # [4, B, H]
    x = jnp.pad(x, ((0, 0), (0, Bp - B), (0, Hp - H)))         # [4, Bp, Hp]
    x = x.reshape(4, n_tiles, tb, Hp).transpose(1, 0, 2, 3)    # [nt, 4, TB, Hp]
    x = x.reshape(n_tiles * 4 * tb, Hp).astype(jnp.bfloat16)   # [nt*4*TB, Hp]

    wp = jnp.pad(w, ((0, Hp - H), (0, Dp - D))).astype(jnp.bfloat16)

    hinge = pl.pallas_call(
        _rel_relatedness_kernel,
        out_shape=jax.ShapeDtypeStruct((Bp, 1), jnp.float32),
        grid=(n_tiles,),
        in_specs=[
            pl.BlockSpec((4 * tb, Hp), lambda i: (i, 0)),   # stacked input tile
            pl.BlockSpec((Hp, Dp), lambda i: (0, 0)),       # weight stays resident
        ],
        out_specs=pl.BlockSpec((tb, 1), lambda i: (i, 0)),
        compiler_params=pltpu.CompilerParams(
            dimension_semantics=("parallel",),
            vmem_limit_bytes=_vmem_budget_bytes(tb, Hp, Dp),
        ),
    )(x, wp)

    # Global mean over the true batch only (padded rows excluded here).
    return jnp.sum(hinge[:B, 0]) / B


def _reference(a1, b1, a2, b2, w):
    def enc(x):
        return jnp.dot(x.astype(jnp.bfloat16), w.astype(jnp.bfloat16),
                       preferred_element_type=jnp.float32)

    def cos(x, y):
        nx = jnp.maximum(jnp.sqrt(jnp.sum(x * x, axis=1)), COS_EPS)
        ny = jnp.maximum(jnp.sqrt(jnp.sum(y * y, axis=1)), COS_EPS)
        return jnp.sum(x * y, axis=1) / (nx * ny)

    rel1 = cos(enc(a1), enc(b1))
    rel2 = cos(enc(a2), enc(b2))
    return jnp.mean(jnp.maximum(MARGIN + rel2 - rel1, 0.0))


if __name__ == "__main__":
    key = jax.random.PRNGKey(0)
    B, H, D = 64, 128, 128          # lane-dense H/D, small batch
    k1, k2, k3, k4, kw = jax.random.split(key, 5)

    a1 = jax.random.normal(k1, (B, H), dtype=jnp.float32)
    b1 = jax.random.normal(k2, (B, H), dtype=jnp.float32)
    a2 = jax.random.normal(k3, (B, H), dtype=jnp.float32)
    b2 = jax.random.normal(k4, (B, H), dtype=jnp.float32)
    # Deterministic synthetic encoder weight (stands in for self.model).
    w = jax.random.normal(kw, (H, D), dtype=jnp.float32) * 0.1

    # tb=32 -> 2 grid steps, exercising the pipelined/parallel batch tiling.
    loss = relative_relatedness_loss(a1, b1, a2, b2, w, tb=32)
    jax.block_until_ready(loss)

    ref = _reference(a1, b1, a2, b2, w)
    assert jnp.allclose(loss, ref, atol=1e-4, rtol=1e-4), (loss, ref)

    print("KERNEL_OK")
</pallas_src>

<mosaic_0001>
module attributes {stable_mosaic.version = 11 : i64} {
  func.func @_rel_relatedness_kernel(%arg0: i32, %arg1: memref<128x128xbf16, #tpu.memory_space<vmem>>, %arg2: memref<128x128xbf16, #tpu.memory_space<vmem>>, %arg3: memref<32x1xf32, #tpu.memory_space<vmem>>) attributes {dimension_semantics = [#tpu.dimension_semantics<parallel>], iteration_bounds = array<i64: 2>, scalar_prefetch = 0 : i64, scratch_operands = 0 : i64, tpu.core_type = #tpu.core_type<tc>, window_params = [{transform_indices = @transform_0, window_bounds = array<i64: 128, 128>}, {pipeline_mode = #tpu.pipeline_mode<synchronous>, transform_indices = @transform_1, window_bounds = array<i64: 128, 128>}, {transform_indices = @transform_2, window_bounds = array<i64: 32, 1>}]} {
    %c0 = arith.constant 0 : index
    %c0_0 = arith.constant 0 : index
    %0 = vector.load %arg1[%c0, %c0_0] : memref<128x128xbf16, #tpu.memory_space<vmem>>, vector<128x128xbf16>
    %c0_1 = arith.constant 0 : index
    %c0_2 = arith.constant 0 : index
    %1 = vector.load %arg2[%c0_1, %c0_2] : memref<128x128xbf16, #tpu.memory_space<vmem>>, vector<128x128xbf16>
    %cst = arith.constant dense<0.000000e+00> : vector<128x128xf32>
    %2 = tpu.matmul %0, %1, %cst {dimension_numbers = #tpu.dot_dimension_numbers<[1], [0], [0], [1], [0, 0, 1, 1], [], []>} : vector<128x128xbf16>, vector<128x128xbf16>, vector<128x128xf32> -> vector<128x128xf32>
    %3 = vector.extract_strided_slice %2 {offsets = [0, 0], sizes = [32, 128], strides = [1, 1]} : vector<128x128xf32> to vector<32x128xf32>
    %4 = vector.extract_strided_slice %2 {offsets = [32, 0], sizes = [32, 128], strides = [1, 1]} : vector<128x128xf32> to vector<32x128xf32>
    %5 = vector.extract_strided_slice %2 {offsets = [64, 0], sizes = [32, 128], strides = [1, 1]} : vector<128x128xf32> to vector<32x128xf32>
    %6 = vector.extract_strided_slice %2 {offsets = [96, 0], sizes = [32, 128], strides = [1, 1]} : vector<128x128xf32> to vector<32x128xf32>
    %7 = arith.mulf %3, %4 : vector<32x128xf32>
    %cst_3 = arith.constant dense<0.000000e+00> : vector<32xf32>
    %8 = vector.multi_reduction <add>, %7, %cst_3 [1] : vector<32x128xf32> to vector<32xf32>
    %9 = vector.shape_cast %8 : vector<32xf32> to vector<32x1xf32>
    %10 = arith.mulf %3, %3 : vector<32x128xf32>
    %cst_4 = arith.constant dense<0.000000e+00> : vector<32xf32>
    %11 = vector.multi_reduction <add>, %10, %cst_4 [1] : vector<32x128xf32> to vector<32xf32>
    %12 = vector.shape_cast %11 : vector<32xf32> to vector<32x1xf32>
    %13 = arith.mulf %4, %4 : vector<32x128xf32>
    %cst_5 = arith.constant dense<0.000000e+00> : vector<32xf32>
    %14 = vector.multi_reduction <add>, %13, %cst_5 [1] : vector<32x128xf32> to vector<32xf32>
    %15 = vector.shape_cast %14 : vector<32xf32> to vector<32x1xf32>
    %cst_6 = arith.constant 1.000000e-16 : f32
    %16 = vector.broadcast %cst_6 : f32 to vector<32x1xf32>
    %17 = arith.maximumf %12, %16 : vector<32x1xf32>
    %cst_7 = arith.constant 1.000000e-16 : f32
    %18 = vector.broadcast %cst_7 : f32 to vector<32x1xf32>
    %19 = arith.maximumf %15, %18 : vector<32x1xf32>
    %20 = arith.mulf %17, %19 : vector<32x1xf32>
    %21 = math.rsqrt %20 : vector<32x1xf32>
    %22 = arith.mulf %9, %21 : vector<32x1xf32>
    %23 = arith.mulf %5, %6 : vector<32x128xf32>
    %cst_8 = arith.constant dense<0.000000e+00> : vector<32xf32>
    %24 = vector.multi_reduction <add>, %23, %cst_8 [1] : vector<32x128xf32> to vector<32xf32>
    %25 = vector.shape_cast %24 : vector<32xf32> to vector<32x1xf32>
    %26 = arith.mulf %5, %5 : vector<32x128xf32>
    %cst_9 = arith.constant dense<0.000000e+00> : vector<32xf32>
    %27 = vector.multi_reduction <add>, %26, %cst_9 [1] : vector<32x128xf32> to vector<32xf32>
    %28 = vector.shape_cast %27 : vector<32xf32> to vector<32x1xf32>
    %29 = arith.mulf %6, %6 : vector<32x128xf32>
    %cst_10 = arith.constant dense<0.000000e+00> : vector<32xf32>
    %30 = vector.multi_reduction <add>, %29, %cst_10 [1] : vector<32x128xf32> to vector<32xf32>
    %31 = vector.shape_cast %30 : vector<32xf32> to vector<32x1xf32>
    %cst_11 = arith.constant 1.000000e-16 : f32
    %32 = vector.broadcast %cst_11 : f32 to vector<32x1xf32>
    %33 = arith.maximumf %28, %32 : vector<32x1xf32>
    %cst_12 = arith.constant 1.000000e-16 : f32
    %34 = vector.broadcast %cst_12 : f32 to vector<32x1xf32>
    %35 = arith.maximumf %31, %34 : vector<32x1xf32>
    %36 = arith.mulf %33, %35 : vector<32x1xf32>
    %37 = math.rsqrt %36 : vector<32x1xf32>
    %38 = arith.mulf %25, %37 : vector<32x1xf32>
    %cst_13 = arith.constant 5.000000e-02 : f32
    %39 = vector.broadcast %cst_13 : f32 to vector<32x1xf32>
    %40 = arith.addf %39, %38 : vector<32x1xf32>
    %41 = arith.subf %40, %22 : vector<32x1xf32>
    %cst_14 = arith.constant 0.000000e+00 : f32
    %42 = vector.broadcast %cst_14 : f32 to vector<32x1xf32>
    %43 = arith.maximumf %41, %42 : vector<32x1xf32>
    %c0_15 = arith.constant 0 : index
    %c0_16 = arith.constant 0 : index
    %44 = vector.load %arg3[%c0_15, %c0_16] : memref<32x1xf32, #tpu.memory_space<vmem>>, vector<32x1xf32>
    tpu.vector_store %arg3[%c0_15, %c0_16], %43 {strides = array<i32>} : memref<32x1xf32, #tpu.memory_space<vmem>>, vector<32x1xf32>,
    return
  }
  func.func @transform_0(%arg0: i32) -> (i32, i32) {
    %c0_i32 = arith.constant 0 : i32
    %c0_i32_0 = arith.constant 0 : i32
    return %arg0, %c0_i32 : i32, i32
  }
  func.func @transform_1(%arg0: i32) -> (i32, i32) {
    %c0_i32 = arith.constant 0 : i32
    %c0_i32_0 = arith.constant 0 : i32
    %c0_i32_1 = arith.constant 0 : i32
    return %c0_i32, %c0_i32_0 : i32, i32
  }
  func.func @transform_2(%arg0: i32) -> (i32, i32) {
    %c0_i32 = arith.constant 0 : i32
    %c0_i32_0 = arith.constant 0 : i32
    return %arg0, %c0_i32 : i32, i32
  }
}

</mosaic_0001>

<llo_original>
// kernel: tpu_custom_call.1
$region0: #{tpu_custom_call.1}
  #allocation0 [shape = 'u32[]', space=smem, size = 0x4, offset = 0x4, fixed_abs, tag = 'smem constant byte address 0x4 - core index']
  #allocation1 [shape = 'u32[144,128]{1,0:T(1,128)}', space=vmem, size = 0x12000, scoped, tag = 'internal scratch']
  %s0 = inlined_call_operand.hbm [shape: bf16[256,128], index: 0, kind: input, shape index: {}]
  %s1 = inlined_call_operand.hbm [shape: bf16[128,128], index: 1, kind: input, shape index: {}]
  %s2 = inlined_call_operand.vmem [shape: f32[64,1], index: 2, kind: output, shape index: {}]
  %s3 = sld [smem:[#allocation0]]
  $region49: #{tpu_custom_call.1} parent=0
    _
  %s5 = ssub.s32 1, %s3
  %s6 = scalar_select 0, %s5, %s3
  $region1: #{tpu_custom_call.1} parent=0
    #allocation2 [shape = 'u8[65536]{0}', space=vmem, size = 0x10000, scoped, tag = 'input window, operand 0']
    #allocation3 [shape = 's32[2]{0}', space=sflag, size = 0x8, scoped, tag = 'scoped memory for tpu_custom_call.1']
    #allocation4 [shape = 'u8[32768]{0}', space=vmem, size = 0x8000, scoped, tag = 'input window, operand 1, single buffered']
    #allocation5 [shape = 's32[1]{0}', space=sflag, size = 0x4, scoped, tag = 'scoped memory for tpu_custom_call.1']
    %7 = vsyncpa [#allocation3], 0
    %s8 = scalar_lea.sflag [#allocation3], 1
    %9 = vsyncpa %s8, 0
    %10 = vsyncpa [#allocation5], 0
    loop: start=0, step=1, limit=4
    $region2: #{tpu_custom_call.1} parent=1 // loop_pre_header
      _
    $region3: #{tpu_custom_call.1} parent=1 // loop_header
      %s12 = sphi 0, %s16
      %p13 = scmp.ge.s32.totalorder %s12, 4
      %s22 = sphi 0, %s24
      %s25 = sphi 0, %s22
      %s26 = sphi 0, %s25
      %s42 = sphi 0, %s26
      %s46 = sphi 0, %s46
      %s48 = sphi 0, %s46
      %s49 = sphi 0, %s48
      %s63 = sphi 0, %s49
      %s69 = sphi 0, %s71
      %s72 = sphi 0, %s69
      %s73 = sphi 0, %s72
      %s89 = sphi 0, %s73
    $region4: #{tpu_custom_call.1} parent=1 // loop_header_branch
      %15 = sbr.rel (%p13) target = $region8
    $region5: #{tpu_custom_call.1} parent=1 // loop_body
      %s17 = ssub.s32 %s12, 1
      %s18 = ssub.s32 %s12, 2
      %s19 = sadd.s32 %s12, 1
      %s20 = ssub.s32 %s12, %s19
      %p21 = scmp.eq.s32.totalorder %s20, 0
      %s23 = sadd.s32 %s22, 1
      %s24 = scalar_select %p21, %s22, %s23
      %p27 = pneg %p21
      %p28 = scmp.eq.s32.totalorder %s12, 1
      %p29 = por %p27, %p28
      %p30 = scmp.ne.s32.totalorder %s22, %s25
      %p31 = scmp.eq.s32.totalorder %s12, 0
      %p32 = por %p30, %p31
      %p33 = scmp.ne.s32.totalorder %s22, %s25
      %p34 = scmp.eq.s32.totalorder %s17, 1
      %p35 = por %p33, %p34
      %p36 = scmp.ne.s32.totalorder %s25, %s26
      %p37 = scmp.eq.s32.totalorder %s17, 0
      %p38 = por %p36, %p37
      %p39 = scmp.ne.s32.totalorder %s25, %s26
      %p40 = scmp.eq.s32.totalorder %s18, 1
      %p41 = por %p39, %p40
      %p43 = scmp.ne.s32.totalorder %s26, %s42
      %p44 = scmp.eq.s32.totalorder %s18, 0
      %p45 = por %p43, %p44
      %s47 = sadd.s32 %s46, 1
      %p50 = scmp.eq.s32.totalorder %s12, 1
      %p51 = scmp.ne.s32.totalorder %s46, %s48
      %p52 = scmp.eq.s32.totalorder %s12, 0
      %p53 = por %p51, %p52
      %p54 = scmp.ne.s32.totalorder %s46, %s48
      %p55 = scmp.eq.s32.totalorder %s17, 1
      %p56 = por %p54, %p55
      %p57 = scmp.ne.s32.totalorder %s48, %s49
      %p58 = scmp.eq.s32.totalorder %s17, 0
      %p59 = por %p57, %p58
      %p60 = scmp.ne.s32.totalorder %s48, %s49
      %p61 = scmp.eq.s32.totalorder %s18, 1
      %p62 = por %p60, %p61
      %p64 = scmp.ne.s32.totalorder %s49, %s63
      %p65 = scmp.eq.s32.totalorder %s18, 0
      %p66 = por %p64, %p65
      %s67 = ssub.s32 %s12, %s19
      %p68 = scmp.eq.s32.totalorder %s67, 0
      %s70 = sadd.s32 %s69, 1
      %s71 = scalar_select %p68, %s69, %s70
      %p74 = pneg %p68
      %p75 = scmp.eq.s32.totalorder %s12, 1
      %p76 = por %p74, %p75
      %p77 = scmp.ne.s32.totalorder %s69, %s72
      %p78 = scmp.eq.s32.totalorder %s12, 0
      %p79 = por %p77, %p78
      %p80 = scmp.ne.s32.totalorder %s69, %s72
      %p81 = scmp.eq.s32.totalorder %s17, 1
      %p82 = por %p80, %p81
      %p83 = scmp.ne.s32.totalorder %s72, %s73
      %p84 = scmp.eq.s32.totalorder %s17, 0
      %p85 = por %p83, %p84
      %p86 = scmp.ne.s32.totalorder %s72, %s73
      %p87 = scmp.eq.s32.totalorder %s18, 1
      %p88 = por %p86, %p87
      %p90 = scmp.ne.s32.totalorder %s73, %s89
      %p91 = scmp.eq.s32.totalorder %s18, 0
      %p92 = por %p90, %p91
      %p93 = scmp.le.s32.totalorder 1, %s12
      %p94 = scmp.lt.s32.totalorder %s12, 3
      %p95 = pnand %p93, %p94
      %p96 = pneg %p95
      // Predicated region
      $region9: #{tpu_custom_call.1} parent=5 // pred_check
        _
      $region10: #{tpu_custom_call.1} parent=5 // pred_check_branch
        %98 = sbr.rel (%p95) target = $region12
      $region11: #{tpu_custom_call.1} parent=5 // pred_region
        %s99 = ssub.s32 %s12, 1
        // Predicated region
        $region13: #{tpu_custom_call.1} parent=11 // pred_check
          %p100 = pneg %p59
        $region14: #{tpu_custom_call.1} parent=11 // pred_check_branch
          %102 = sbr.rel (%p100) target = $region16
        $region15: #{tpu_custom_call.1} parent=11 // pred_region
          %s104 = ssub.s32 1024, 1024
          %105 = vsyncadd [#allocation5], %s104
          %s106 = sshll.u32 [#allocation4], 4
          %s107 = int_to_ptr.vmem [resolvable:$true] %s106
          %112 = dma.hbm_to_vmem [thread:$0]  %s1, 1024, %s107, [#allocation5], 64, 64, 4
        $region16: #{tpu_custom_call.1} parent=11 // pred_fallthru
          _
      $region12: #{tpu_custom_call.1} parent=5 // pred_fallthru
        _
      %p113 = scmp.lt.s32.totalorder %s12, 2
      // Predicated region
      $region17: #{tpu_custom_call.1} parent=5 // pred_check
        %p114 = pneg %p113
      $region18: #{tpu_custom_call.1} parent=5 // pred_check_branch
        %116 = sbr.rel (%p114) target = $region20
      $region19: #{tpu_custom_call.1} parent=5 // pred_region
        // Predicated region
        $region21: #{tpu_custom_call.1} parent=19 // pred_check
          %p117 = pneg %p32
        $region22: #{tpu_custom_call.1} parent=19 // pred_check_branch
          %119 = sbr.rel (%p117) target = $region24
        $region23: #{tpu_custom_call.1} parent=19 // pred_region
          %s120 = sand.u32 %s22, 1
          %s121 = scalar_lea.sflag [#allocation3], %s120
          %s122 = sand.u32 %s22, 1
          %s123 = smul.addr %s122, 64
          %s124 = scalar_lea.vmem [#allocation2], %s123
          %s125 = smul.u32 16, %s12
          %s127 = ssub.s32 1024, 1024
          %128 = vsyncadd %s121, %s127
          %s129 = smul.addr %s125, 64
          %s130 = scalar_lea.hbm %s0, %s129
          %s131 = sshll.u32 %s124, 4
          %s132 = int_to_ptr.vmem [resolvable:$true] %s131
          %137 = dma.hbm_to_vmem [thread:$0]  %s130, 1024, %s132, %s121, 64, 64, 4
        $region24: #{tpu_custom_call.1} parent=19 // pred_fallthru
          _
      $region20: #{tpu_custom_call.1} parent=5 // pred_fallthru
        _
      %p138 = scmp.le.s32.totalorder 1, %s12
      %p139 = scmp.lt.s32.totalorder %s12, 3
      %p140 = pnand %p138, %p139
      %p141 = pneg %p140
      // Predicated region
      $region25: #{tpu_custom_call.1} parent=5 // pred_check
        _
      $region26: #{tpu_custom_call.1} parent=5 // pred_check_branch
        %143 = sbr.rel (%p140) target = $region28
      $region27: #{tpu_custom_call.1} parent=5 // pred_region
        %s144 = ssub.s32 %s12, 1
        %s145 = sand.u32 %s25, 1
        %s146 = scalar_lea.sflag [#allocation3], %s145
        %s147 = sand.u32 %s25, 1
        %s148 = smul.addr %s147, 64
        %s149 = scalar_lea.vmem [#allocation2], %s148
        // Predicated region
        $region29: #{tpu_custom_call.1} parent=27 // pred_check
          %p150 = pneg %p38
        $region30: #{tpu_custom_call.1} parent=27 // pred_check_branch
          %152 = sbr.rel (%p150) target = $region32
        $region31: #{tpu_custom_call.1} parent=27 // pred_region
          %153 = dma.done %s146, 1024
        $region32: #{tpu_custom_call.1} parent=27 // pred_fallthru
          _
        // Predicated region
        $region33: #{tpu_custom_call.1} parent=27 // pred_check
          %p154 = pneg %p59
        $region34: #{tpu_custom_call.1} parent=27 // pred_check_branch
          %156 = sbr.rel (%p154) target = $region36
        $region35: #{tpu_custom_call.1} parent=27 // pred_region
          %157 = dma.done [#allocation5], 1024
        $region36: #{tpu_custom_call.1} parent=27 // pred_fallthru
          _
        %s158 = sand.u32 %s25, 1
        %s159 = scalar_lea.sflag [#allocation3], %s158
        %s160 = sand.u32 %s25, 1
        %s161 = smul.addr %s160, 64
        %s162 = scalar_lea.vmem [#allocation2], %s161
        %p163 = pneg %p38
        %p164 = pneg %p35
        %p165 = pneg %p59
        %p166 = pneg %p56
        %p167 = pneg %p85
        %p168 = pneg %p82
        %s169 = smul.u32 4, %s17
        %p170 = scmp.lt.s32.totalorder %s169, 7
        %s171 = scalar_select %p170, %s169, 7
        %s172 = smul.addr %s171, 8
        %s173 = scalar_lea.vmem %s2, %s172
        %s174 = smul.u32 16, %s17
        %s175 = smul.u32 4, %s17
        %p176 = scmp.lt.s32.totalorder %s175, 7
        %s177 = scalar_select %p176, %s175, 7
        %s178 = smul.addr %s177, 8
        %s179 = scalar_lea.vmem %s2, %s178
        %s180 = smul.u32 4, %s17
        %v182 = vld [vmem:[%s149] sm:$0xf]
        %v183 = vld [vmem:[%s149 + $0x4] sm:$0xf]
        %v184 = vld [vmem:[%s149 + $0x8] sm:$0xf]
        %v185 = vld [vmem:[%s149 + $0xc] sm:$0xf]
        %v186 = vld [vmem:[%s149 + $0x10] sm:$0xf]
        %v187 = vld [vmem:[%s149 + $0x14] sm:$0xf]
        %v188 = vld [vmem:[%s149 + $0x18] sm:$0xf]
        %v189 = vld [vmem:[%s149 + $0x1c] sm:$0xf]
        %v190 = vld [vmem:[%s149 + $0x20] sm:$0xf]
        %v191 = vld [vmem:[%s149 + $0x24] sm:$0xf]
        %v192 = vld [vmem:[%s149 + $0x28] sm:$0xf]
        %v193 = vld [vmem:[%s149 + $0x2c] sm:$0xf]
        %v194 = vld [vmem:[%s149 + $0x30] sm:$0xf]
        %v195 = vld [vmem:[%s149 + $0x34] sm:$0xf]
        %v196 = vld [vmem:[%s149 + $0x38] sm:$0xf]
        %v197 = vld [vmem:[%s149 + $0x3c] sm:$0xf]
        %v198 = vld [vmem:[#allocation4] sm:$0xf]
        %v199 = vld [vmem:[#allocation4 + $0x4] sm:$0xf]
        %v200 = vld [vmem:[#allocation4 + $0x8] sm:$0xf]
        %v201 = vld [vmem:[#allocation4 + $0xc] sm:$0xf]
        %v202 = vld [vmem:[#allocation4 + $0x10] sm:$0xf]
        %v203 = vld [vmem:[#allocation4 + $0x14] sm:$0xf]
        %v204 = vld [vmem:[#allocation4 + $0x18] sm:$0xf]
        %v205 = vld [vmem:[#allocation4 + $0x1c] sm:$0xf]
        %v206 = vld [vmem:[#allocation4 + $0x20] sm:$0xf]
        %v207 = vld [vmem:[#allocation4 + $0x24] sm:$0xf]
        %v208 = vld [vmem:[#allocation4 + $0x28] sm:$0xf]
        %v209 = vld [vmem:[#allocation4 + $0x2c] sm:$0xf]
        %v210 = vld [vmem:[#allocation4 + $0x30] sm:$0xf]
        %v211 = vld [vmem:[#allocation4 + $0x34] sm:$0xf]
        %v212 = vld [vmem:[#allocation4 + $0x38] sm:$0xf]
        %v213 = vld [vmem:[#allocation4 + $0x3c] sm:$0xf]
        %v230 = vunpack.c.l.b16 %v182
        %v231 = vunpack.c.l.b16 %v183
        %v232 = vunpack.c.l.b16 %v184
        %v233 = vunpack.c.l.b16 %v185
        %v234 = vunpack.c.l.b16 %v186
        %v235 = vunpack.c.l.b16 %v187
        %v236 = vunpack.c.l.b16 %v188
        %v237 = vunpack.c.l.b16 %v189
        %v238 = vunpack.c.l.b16 %v190
        %v239 = vunpack.c.l.b16 %v191
        %v240 = vunpack.c.l.b16 %v192
        %v241 = vunpack.c.l.b16 %v193
        %v242 = vunpack.c.l.b16 %v194
        %v243 = vunpack.c.l.b16 %v195
        %v244 = vunpack.c.l.b16 %v196
        %v245 = vunpack.c.l.b16 %v197
        %v246 = vpack.c.b16 %v231, %v230
        %v247 = vpack.c.b16 %v233, %v232
        %v248 = vpack.c.b16 %v235, %v234
        %v249 = vpack.c.b16 %v237, %v236
        %v250 = vpack.c.b16 %v239, %v238
        %v251 = vpack.c.b16 %v241, %v240
        %v252 = vpack.c.b16 %v243, %v242
        %v253 = vpack.c.b16 %v245, %v244
        %v278 = vunpack.c.l.b16 %v198
        %v279 = vunpack.c.l.b16 %v199
        %v280 = vunpack.c.l.b16 %v200
        %v281 = vunpack.c.l.b16 %v201
        %v282 = vunpack.c.l.b16 %v202
        %v283 = vunpack.c.l.b16 %v203
        %v284 = vunpack.c.l.b16 %v204
        %v285 = vunpack.c.l.b16 %v205
        %v286 = vunpack.c.l.b16 %v206
        %v287 = vunpack.c.l.b16 %v207
        %v288 = vunpack.c.l.b16 %v208
        %v289 = vunpack.c.l.b16 %v209
        %v290 = vunpack.c.l.b16 %v210
        %v291 = vunpack.c.l.b16 %v211
        %v292 = vunpack.c.l.b16 %v212
        %v293 = vunpack.c.l.b16 %v213
        %v294 = vpack.c.b16 %v279, %v278
        %v295 = vpack.c.b16 %v281, %v280
        %v296 = vpack.c.b16 %v283, %v282
        %v297 = vpack.c.b16 %v285, %v284
        %v298 = vpack.c.b16 %v287, %v286
        %v299 = vpack.c.b16 %v289, %v288
        %v300 = vpack.c.b16 %v291, %v290
        %v301 = vpack.c.b16 %v293, %v292
        %310 = vmatprep.subr.bf16.mxu0 0
        %311 = vmatpush1.bf16.msra.mxu0 %v294
        %312 = vmatprep.subr.bf16.mxu0 0
        %313 = vmatpush1.bf16.msra.mxu0 %v295
        %314 = vmatprep.subr.bf16.mxu0 0
        %315 = vmatpush1.bf16.msra.mxu0 %v296
        %316 = vmatprep.subr.bf16.mxu0 0
        %317 = vmatpush1.bf16.msra.mxu0 %v297
        %318 = vmatprep.subr.bf16.mxu0 0
        %319 = vmatpush1.bf16.msra.mxu0 %v298
        %320 = vmatprep.subr.bf16.mxu0 0
        %321 = vmatpush1.bf16.msra.mxu0 %v299
        %322 = vmatprep.subr.bf16.mxu0 0
        %323 = vmatpush1.bf16.msra.mxu0 %v300
        %324 = vmatprep.subr.bf16.mxu0 0
        %325 = vmatpush1.bf16.msra.mxu0 %v301
        %326 = vmatprep.subr.bf16.mxu0 0
        %327 = vmatpush1.bf16.msra.mxu0 0
        %328 = vmatprep.subr.bf16.mxu0 0
        %329 = vmatpush1.bf16.msra.mxu0 0
        %330 = vmatprep.subr.bf16.mxu0 0
        %331 = vmatpush1.bf16.msra.mxu0 0
        %332 = vmatprep.subr.bf16.mxu0 0
        %333 = vmatpush1.bf16.msra.mxu0 0
        %334 = vmatprep.subr.bf16.mxu0 0
        %335 = vmatpush1.bf16.msra.mxu0 0
        %336 = vmatprep.subr.bf16.mxu0 0
        %337 = vmatpush1.bf16.msra.mxu0 0
        %338 = vmatprep.subr.bf16.mxu0 0
        %339 = vmatpush1.bf16.msra.mxu0 0
        %340 = vmatprep.subr.bf16.mxu0 0
        %341 = vmatpush1.bf16.msra.mxu0 0
        %342 = vmatprep.mubr.bf16.mxu0 0
        %343 = vmatmul.mubr.bf16.gmra.mrb[0].mxu0 %v246
        %v344 = vpop.f32.mrb[0].mxu0
        %v345 = vadd.f32 0.0, %v344
        %v346 = vpop.f32.mrb[0].mxu0
        %v347 = vpop.f32.mrb[0].mxu0
        %v348 = vadd.f32 0.0, %v347
        %v349 = vpop.f32.mrb[0].mxu0
        %350 = vmatprep.mubr.bf16.mxu0 0
        %351 = vmatmul.mubr.bf16.gmra.mrb[0].mxu0 %v247
        %v352 = vpop.f32.mrb[0].mxu0
        %v353 = vadd.f32 0.0, %v352
        %v354 = vpop.f32.mrb[0].mxu0
        %v355 = vpop.f32.mrb[0].mxu0
        %v356 = vadd.f32 0.0, %v355
        %v357 = vpop.f32.mrb[0].mxu0
        %358 = vmatprep.mubr.bf16.mxu0 0
        %359 = vmatmul.mubr.bf16.gmra.mrb[0].mxu0 %v248
        %v360 = vpop.f32.mrb[0].mxu0
        %v361 = vadd.f32 0.0, %v360
        %v362 = vpop.f32.mrb[0].mxu0
        %v363 = vpop.f32.mrb[0].mxu0
        %v364 = vadd.f32 0.0, %v363
        %v365 = vpop.f32.mrb[0].mxu0
        %366 = vmatprep.mubr.bf16.mxu0 0
        %367 = vmatmul.mubr.bf16.gmra.mrb[0].mxu0 %v249
        %v368 = vpop.f32.mrb[0].mxu0
        %v369 = vadd.f32 0.0, %v368
        %v370 = vpop.f32.mrb[0].mxu0
        %v371 = vpop.f32.mrb[0].mxu0
        %v372 = vadd.f32 0.0, %v371
        %v373 = vpop.f32.mrb[0].mxu0
        %374 = vmatprep.mubr.bf16.mxu0 0
        %375 = vmatmul.mubr.bf16.gmra.mrb[0].mxu0 %v250
        %v376 = vpop.f32.mrb[0].mxu0
        %v377 = vadd.f32 0.0, %v376
        %v378 = vpop.f32.mrb[0].mxu0
        %v379 = vpop.f32.mrb[0].mxu0
        %v380 = vadd.f32 0.0, %v379
        %v381 = vpop.f32.mrb[0].mxu0
        %382 = vmatprep.mubr.bf16.mxu0 0
        %383 = vmatmul.mubr.bf16.gmra.mrb[0].mxu0 %v251
        %v384 = vpop.f32.mrb[0].mxu0
        %v385 = vadd.f32 0.0, %v384
        %v386 = vpop.f32.mrb[0].mxu0
        %v387 = vpop.f32.mrb[0].mxu0
        %v388 = vadd.f32 0.0, %v387
        %v389 = vpop.f32.mrb[0].mxu0
        %390 = vmatprep.mubr.bf16.mxu0 0
        %391 = vmatmul.mubr.bf16.gmra.mrb[0].mxu0 %v252
        %v392 = vpop.f32.mrb[0].mxu0
        %v393 = vadd.f32 0.0, %v392
        %v394 = vpop.f32.mrb[0].mxu0
        %v395 = vpop.f32.mrb[0].mxu0
        %v396 = vadd.f32 0.0, %v395
        %v397 = vpop.f32.mrb[0].mxu0
        %398 = vmatprep.mubr.bf16.mxu0 0
        %399 = vmatmul.mubr.bf16.gmra.mrb[0].mxu0 %v253
        %v400 = vpop.f32.mrb[0].mxu0
        %v401 = vadd.f32 0.0, %v400
        %v402 = vpop.f32.mrb[0].mxu0
        %v403 = vpop.f32.mrb[0].mxu0
        %v404 = vadd.f32 0.0, %v403
        %v405 = vpop.f32.mrb[0].mxu0
        %406 = vdwg.mxu0
        %v407 = vmul.f32 %v345, %v361
        %v408 = vmul.f32 %v348, %v364
        %v409 = vmul.f32 %v353, %v369
        %v410 = vmul.f32 %v356, %v372
        %411 = vadd.xlane.f32.xlu0 %v407
        %v412 = vpop.xlane.xlu0 %411
        %413 = vadd.xlane.f32.xlu0 %v408
        %v414 = vpop.xlane.xlu0 %413
        %415 = vadd.xlane.f32.xlu0 %v409
        %v416 = vpop.xlane.xlu0 %415
        %417 = vadd.xlane.f32.xlu0 %v410
        %v418 = vpop.xlane.xlu0 %417
        %v419 = vmul.f32 %v345, %v345
        %v420 = vmul.f32 %v348, %v348
        %v421 = vmul.f32 %v353, %v353
        %v422 = vmul.f32 %v356, %v356
        %423 = vadd.xlane.f32.xlu0 %v419
        %v424 = vpop.xlane.xlu0 %423
        %425 = vadd.xlane.f32.xlu0 %v420
        %v426 = vpop.xlane.xlu0 %425
        %427 = vadd.xlane.f32.xlu0 %v421
        %v428 = vpop.xlane.xlu0 %427
        %429 = vadd.xlane.f32.xlu0 %v422
        %v430 = vpop.xlane.xlu0 %429
        %v431 = vmul.f32 %v361, %v361
        %v432 = vmul.f32 %v364, %v364
        %v433 = vmul.f32 %v369, %v369
        %v434 = vmul.f32 %v372, %v372
        %435 = vadd.xlane.f32.xlu0 %v431
        %v436 = vpop.xlane.xlu0 %435
        %437 = vadd.xlane.f32.xlu0 %v432
        %v438 = vpop.xlane.xlu0 %437
        %439 = vadd.xlane.f32.xlu0 %v433
        %v440 = vpop.xlane.xlu0 %439
        %441 = vadd.xlane.f32.xlu0 %v434
        %v442 = vpop.xlane.xlu0 %441
        %v443 = vmax.f32 %v424, 1e-16
        %v444 = vmax.f32 %v426, 1e-16
        %v445 = vmax.f32 %v428, 1e-16
        %v446 = vmax.f32 %v430, 1e-16
        %v447 = vmax.f32 %v436, 1e-16
        %v448 = vmax.f32 %v438, 1e-16
        %v449 = vmax.f32 %v440, 1e-16
        %v450 = vmax.f32 %v442, 1e-16
        %v451 = vmul.f32 %v443, %v447
        %v452 = vmul.f32 %v444, %v448
        %v453 = vmul.f32 %v445, %v449
        %v454 = vmul.f32 %v446, %v450
        %v455 = vrsqrt.pop %v451
        %v456 = vrsqrt.pop %v452
        %v457 = vrsqrt.pop %v453
        %v458 = vrsqrt.pop %v454
        %v459 = vmul.f32 %v412, %v455
        %v460 = vmul.f32 %v414, %v456
        %v461 = vmul.f32 %v416, %v457
        %v462 = vmul.f32 %v418, %v458
        %v463 = vmul.f32 %v377, %v393
        %v464 = vmul.f32 %v380, %v396
        %v465 = vmul.f32 %v385, %v401
        %v466 = vmul.f32 %v388, %v404
        %467 = vadd.xlane.f32.xlu0 %v463
        %v468 = vpop.xlane.xlu0 %467
        %469 = vadd.xlane.f32.xlu0 %v464
        %v470 = vpop.xlane.xlu0 %469
        %471 = vadd.xlane.f32.xlu0 %v465
        %v472 = vpop.xlane.xlu0 %471
        %473 = vadd.xlane.f32.xlu0 %v466
        %v474 = vpop.xlane.xlu0 %473
        %v475 = vmul.f32 %v377, %v377
        %v476 = vmul.f32 %v380, %v380
        %v477 = vmul.f32 %v385, %v385
        %v478 = vmul.f32 %v388, %v388
        %479 = vadd.xlane.f32.xlu0 %v475
        %v480 = vpop.xlane.xlu0 %479
        %481 = vadd.xlane.f32.xlu0 %v476
        %v482 = vpop.xlane.xlu0 %481
        %483 = vadd.xlane.f32.xlu0 %v477
        %v484 = vpop.xlane.xlu0 %483
        %485 = vadd.xlane.f32.xlu0 %v478
        %v486 = vpop.xlane.xlu0 %485
        %v487 = vmul.f32 %v393, %v393
        %v488 = vmul.f32 %v396, %v396
        %v489 = vmul.f32 %v401, %v401
        %v490 = vmul.f32 %v404, %v404
        %491 = vadd.xlane.f32.xlu0 %v487
        %v492 = vpop.xlane.xlu0 %491
        %493 = vadd.xlane.f32.xlu0 %v488
        %v494 = vpop.xlane.xlu0 %493
        %495 = vadd.xlane.f32.xlu0 %v489
        %v496 = vpop.xlane.xlu0 %495
        %497 = vadd.xlane.f32.xlu0 %v490
        %v498 = vpop.xlane.xlu0 %497
        %v499 = vmax.f32 %v480, 1e-16
        %v500 = vmax.f32 %v482, 1e-16
        %v501 = vmax.f32 %v484, 1e-16
        %v502 = vmax.f32 %v486, 1e-16
        %v503 = vmax.f32 %v492, 1e-16
        %v504 = vmax.f32 %v494, 1e-16
        %v505 = vmax.f32 %v496, 1e-16
        %v506 = vmax.f32 %v498, 1e-16
        %v507 = vmul.f32 %v499, %v503
        %v508 = vmul.f32 %v500, %v504
        %v509 = vmul.f32 %v501, %v505
        %v510 = vmul.f32 %v502, %v506
        %v511 = vrsqrt.pop %v507
        %v512 = vrsqrt.pop %v508
        %v513 = vrsqrt.pop %v509
        %v514 = vrsqrt.pop %v510
        %v515 = vmul.f32 %v468, %v511
        %v516 = vmul.f32 %v470, %v512
        %v517 = vmul.f32 %v472, %v513
        %v518 = vmul.f32 %v474, %v514
        %v519 = vadd.f32 %v515, 0.05
        %v520 = vadd.f32 %v516, 0.05
        %v521 = vadd.f32 %v517, 0.05
        %v522 = vadd.f32 %v518, 0.05
        %v523 = vsub.f32 %v519, %v459
        %v524 = vsub.f32 %v520, %v460
        %v525 = vsub.f32 %v521, %v461
        %v526 = vsub.f32 %v522, %v462
        %v527 = vmax.f32 %v523, 0.0
        %v528 = vmax.f32 %v524, 0.0
        %v529 = vmax.f32 %v525, 0.0
        %v530 = vmax.f32 %v526, 0.0
        %vm531 = vcmask 7168
        %532 = vst.msk [vmem:[%s179] sm:$0xff] %vm531, %v527
        %533 = vst.msk [vmem:[%s179 + $0x8] sm:$0xff] %vm531, %v528
        %534 = vst.msk [vmem:[%s179 + $0x10] sm:$0xff] %vm531, %v529
        %535 = vst.msk [vmem:[%s179 + $0x18] sm:$0xff] %vm531, %v530
        %s536 = smul.u32 4, %s17
        %p537 = scmp.lt.s32.totalorder %s536, 7
        %s538 = scalar_select %p537, %s536, 7
        %s539 = smul.addr %s538, 8
        %s540 = scalar_lea.vmem %s2, %s539
        // Predicated region
        $region37: #{tpu_custom_call.1} parent=27 // pred_check
          %p541 = pneg %p82
        $region38: #{tpu_custom_call.1} parent=27 // pred_check_branch
          %543 = sbr.rel (%p541) target = $region40
        $region39: #{tpu_custom_call.1} parent=27 // pred_region
          %s544 = smul.u32 4, %s17
        $region40: #{tpu_custom_call.1} parent=27 // pred_fallthru
          _
      $region28: #{tpu_custom_call.1} parent=5 // pred_fallthru
        _
      %p545 = scmp.le.s32.totalorder 2, %s12
      // Predicated region
      $region41: #{tpu_custom_call.1} parent=5 // pred_check
        %p546 = pneg %p545
      $region42: #{tpu_custom_call.1} parent=5 // pred_check_branch
        %548 = sbr.rel (%p546) target = $region44
      $region43: #{tpu_custom_call.1} parent=5 // pred_region
        %s549 = ssub.s32 %s12, 2
        // Predicated region
        $region45: #{tpu_custom_call.1} parent=43 // pred_check
          %p550 = pneg %p88
        $region46: #{tpu_custom_call.1} parent=43 // pred_check_branch
          %552 = sbr.rel (%p550) target = $region48
        $region47: #{tpu_custom_call.1} parent=43 // pred_region
          %s553 = smul.u32 4, %s18
          %p554 = scmp.lt.s32.totalorder %s553, 7
          %s555 = scalar_select %p554, %s553, 7
          %s556 = smul.addr %s555, 8
          %s557 = scalar_lea.vmem %s2, %s556
        $region48: #{tpu_custom_call.1} parent=43 // pred_fallthru
          _
      $region44: #{tpu_custom_call.1} parent=5 // pred_fallthru
        _
    $region6: #{tpu_custom_call.1} parent=1 // loop_footer
      %s16 = sadd.s32 1, %s12
    $region7: #{tpu_custom_call.1} parent=1 // loop_footer_branch
      %11 = sbr.rel target = $region3
    $region8: #{tpu_custom_call.1} parent=1 // loop_exit
      _
    %558 = vsyncpa [#allocation3], 1
    %s559 = scalar_lea.sflag [#allocation3], 1
    %560 = vsyncpa %s559, 1
    %561 = vsyncpa [#allocation5], 1

</llo_original>
